<compile_context>
chip_gen: v6e
topology: v6e:2x2x1
jax: 0.10.0
libtpu: 0.0.40
codegen_flags: <defaults>
</compile_context>

<pallas_src>
import functools

import jax
import jax.numpy as jnp
from jax import lax
from jax.experimental import pallas as pl
from jax.experimental.pallas import tpu as pltpu

_LANES = 128


def _chip_targets():
    """(target_total_grid_steps, vmem_limit_bytes) per TPU generation."""
    kind = ""
    try:
        kind = jax.devices()[0].device_kind.lower()
    except Exception:
        pass
    if "v7" in kind:
        # 2 TensorCores/chip, 64 MiB physical VMEM: >= 2 grid steps per core,
        # keep headroom for the double-buffered input/output blocks.
        return 4, 48 * 1024 * 1024
    # v5e / v6e: 1 TensorCore/chip, 128 MiB physical VMEM -> few, large tiles
    # (each grid step costs ~0.35 us of fixed overhead).
    return 2, 96 * 1024 * 1024


def _pick_ho_tile(ho, wo, c, n_batch, target_steps):
    """Largest divisor of `ho` satisfying grid-step and vreg-budget targets."""
    lane_tiles = -(-c // _LANES)
    sub_tiles = -(-wo // 8)
    best = 1
    for tile in range(1, ho + 1):
        if ho % tile:
            continue
        # Enough grid steps to pipeline writeback / feed both TCs on v7x.
        if n_batch * (ho // tile) < target_steps:
            continue
        # Register accumulator (HO_TILE, Wo, C) must stay small enough that the
        # unrolled 3x3 tap loop does not spill (~<=16 vregs for the acc; the
        # hoisted kw window adds a similar amount).
        # TODO(synk): for very large Wo, fall back to a per-output-row
        # fori_loop with a per-row register accumulator instead.
        if tile * sub_tiles * lane_tiles > 16:
            continue
        best = tile
    return best


def _dwconv_kernel(x_ref, dww_ref, dwb_ref, pww_ref, pwb_ref, a1_ref, a2_ref,
                   o_ref, *, stride, W, C, HO_TILE, Wo, OUPp):
    # x_ref:   (H, W, C)        full NHWC image for this batch element
    # dww_ref: (9, C)           depthwise taps, row = 3*kh + kw
    # dwb_ref: (1, C)           depthwise bias
    # pww_ref: (C, OUPp)        pointwise weights (lane-padded only if OUP>=64)
    # pwb_ref: (1, OUPp)        pointwise bias
    # a1_ref/a2_ref: (1,) f32   PReLU alphas in SMEM (scalar reads)
    # o_ref:   (HO_TILE, Wo, OUPp)
    t = pl.program_id(1)
    row0 = t * (HO_TILE * stride)          # first input row of this Ho tile

    # Load the small weight tensors once; index the register values per tap.
    w_dw = dww_ref[...]                    # (9, C)
    b_dw = dwb_ref[...]                    # (1, C)

    # Register-resident accumulator, initialized with the depthwise bias
    # (broadcast hoisted out of the tap loop; written to VMEM exactly once).
    acc = jnp.broadcast_to(b_dw.reshape(1, 1, C), (HO_TILE, Wo, C))

    if stride == 1:
        span = HO_TILE + 2
        for kw in range(3):
            # One sublane-shifted window per kw, reused across all three kh
            # (kh indexing is on the leading, untiled axis -> cheap slice).
            x_kw = x_ref[pl.ds(row0, span), pl.ds(kw, Wo), :]   # (span, Wo, C)
            for kh in range(3):
                patch = x_kw[kh:kh + HO_TILE]
                acc = acc + patch * w_dw[3 * kh + kw]
    else:
        # stride >= 2: deinterleave the W (sublane) axis ONCE into per-parity
        # column planes; column windows hoisted per kw; row decimation stays on
        # the cheap leading (H) axis.
        span = stride * (HO_TILE - 1) + 3
        x_tile = x_ref[pl.ds(row0, span), :, :]                 # (span, W, C)
        planes = [lax.slice(x_tile, (0, p, 0), (span, W, C), (1, stride, 1))
                  for p in range(stride)]
        for kw in range(3):
            plane = planes[kw % stride]
            c0 = kw // stride
            col_win = lax.slice(plane, (0, c0, 0), (span, c0 + Wo, C))
            for kh in range(3):
                patch = lax.slice(col_win, (kh, 0, 0),
                                  (kh + stride * (HO_TILE - 1) + 1, Wo, C),
                                  (stride, 1, 1))
                acc = acc + patch * w_dw[3 * kh + kw]

    # PReLU #1 (single shared alpha, scalar from SMEM).
    a1 = a1_ref[0]
    z = jnp.where(acc > 0, acc, a1 * acc)

    w_pw = pww_ref[...]                    # (C, OUPp)
    b_pw = pwb_ref[...]                    # (1, OUPp)
    if C <= 16:
        # Tiny C: an MXU (M, C<=16) x (C, OUPp) matmul runs at a few percent
        # contraction utilization and the 3D->2D reshape is a relayout copy.
        # Do C unrolled VPU outer-product adds instead, staying in
        # (HO_TILE, Wo, OUPp) layout the whole way.
        y = jnp.broadcast_to(b_pw.reshape(1, 1, OUPp), (HO_TILE, Wo, OUPp))
        for c in range(C):
            y = y + z[:, :, c:c + 1] * w_pw[c:c + 1, :].reshape(1, 1, OUPp)
    else:
        # Production widths: MXU matmul (OUP is lane-padded to 128 by the
        # wrapper in this regime).
        # TODO(synk): cast both operands to bf16 here for C >= 64
        # (preferred_element_type stays f32) for 2-3x MXU throughput.
        y = jnp.dot(z.reshape(HO_TILE * Wo, C), w_pw,
                    preferred_element_type=jnp.float32)
        y = (y + b_pw).reshape(HO_TILE, Wo, OUPp)

    # PReLU #2.
    a2 = a2_ref[0]
    y = jnp.where(y > 0, y, a2 * y)

    o_ref[...] = y.astype(o_ref.dtype)


def depthwise_conv2d_forward(x_nchw, params, *, stride):
    """x_nchw: (N, C, H, W) float32. Returns (N, OUP, Ho, Wo)."""
    dw_w, dw_b, alpha1, pw_w, pw_b, alpha2 = params
    N, C, H, W = x_nchw.shape
    OUP = pw_w.shape[0]
    Ho = (H - 3) // stride + 1
    Wo = (W - 3) // stride + 1
    # Adaptive lane padding: only pad OUP to 128 when it is large enough that a
    # lane-dense tile beats the extra HBM writeback bytes.
    OUPp = (-(-OUP // _LANES) * _LANES) if OUP >= 64 else OUP

    # Layout plumbing (disappears if the whole MTCNN stack stays NHWC).
    x_nhwc = jnp.transpose(x_nchw, (0, 2, 3, 1))                     # (N,H,W,C)
    dww = jnp.transpose(dw_w[:, 0, :, :], (1, 2, 0)).reshape(9, C)   # (9,C)
    dwb = dw_b.reshape(1, C)
    pww = jnp.zeros((C, OUPp), jnp.float32).at[:, :OUP].set(
        jnp.transpose(pw_w[:, :, 0, 0], (1, 0)))                     # (C,OUPp)
    pwb = jnp.zeros((1, OUPp), jnp.float32).at[:, :OUP].set(pw_b.reshape(1, OUP))
    a1 = alpha1.reshape(1).astype(jnp.float32)
    a2 = alpha2.reshape(1).astype(jnp.float32)

    target_steps, vmem_limit = _chip_targets()
    HO_TILE = _pick_ho_tile(Ho, Wo, C, N, target_steps)
    n_tiles = Ho // HO_TILE

    kernel = functools.partial(_dwconv_kernel, stride=stride, W=W, C=C,
                               HO_TILE=HO_TILE, Wo=Wo, OUPp=OUPp)

    # Input is DMA'd once per batch element (its block index ignores the tile
    # axis); output counted at the (possibly padded) stored width.
    flops = int(2 * N * Ho * Wo * C * (9 + OUP))
    bytes_accessed = int(4 * (N * H * W * C + N * Ho * Wo * OUPp
                              + 9 * C + C + C * OUPp + OUPp + 2))

    out_padded = pl.pallas_call(
        kernel,
        out_shape=jax.ShapeDtypeStruct((N, Ho, Wo, OUPp), x_nchw.dtype),
        grid_spec=pltpu.PrefetchScalarGridSpec(
            num_scalar_prefetch=0,
            grid=(N, n_tiles),
            in_specs=[
                # Full image per batch element; block index ignores the Ho-tile
                # axis so Pallas keeps it VMEM-resident across tiles.
                pl.BlockSpec((None, H, W, C), lambda n, t: (n, 0, 0, 0)),
                pl.BlockSpec((9, C), lambda n, t: (0, 0)),
                pl.BlockSpec((1, C), lambda n, t: (0, 0)),
                pl.BlockSpec((C, OUPp), lambda n, t: (0, 0)),
                pl.BlockSpec((1, OUPp), lambda n, t: (0, 0)),
                pl.BlockSpec(memory_space=pltpu.MemorySpace.SMEM),   # alpha1
                pl.BlockSpec(memory_space=pltpu.MemorySpace.SMEM),   # alpha2
            ],
            out_specs=pl.BlockSpec((None, HO_TILE, Wo, OUPp),
                                   lambda n, t: (n, t, 0, 0)),
        ),
        compiler_params=pltpu.CompilerParams(
            dimension_semantics=("parallel", "parallel"),
            vmem_limit_bytes=vmem_limit),
        cost_estimate=pl.CostEstimate(flops=flops, transcendentals=0,
                                      bytes_accessed=bytes_accessed),
    )(x_nhwc, dww, dwb, pww, pwb, a1, a2)

    out = out_padded[..., :OUP] if OUPp != OUP else out_padded
    out = jnp.transpose(out, (0, 3, 1, 2))                           # (N,OUP,Ho,Wo)

    if (C == OUP) and (stride == 1):
        # Mirrors PyTorch: with padding=0 the residual add shape-mismatches in
        # the original module too; fail loudly with a clear message.
        if out.shape != x_nchw.shape:
            raise ValueError(
                "DepthwiseConv2d residual add needs matching shapes (the "
                "PyTorch module has the same padding=0 mismatch): "
                f"{out.shape} vs {x_nchw.shape}")
        out = out + x_nchw
    return out


def _reference(x_nchw, params, *, stride):
    dw_w, dw_b, alpha1, pw_w, pw_b, alpha2 = params
    C = x_nchw.shape[1]
    y = lax.conv_general_dilated(
        x_nchw, dw_w, window_strides=(stride, stride), padding="VALID",
        feature_group_count=C, dimension_numbers=("NCHW", "OIHW", "NCHW"))
    y = y + dw_b[None, :, None, None]
    y = jnp.where(y > 0, y, alpha1 * y)
    y = lax.conv_general_dilated(
        y, pw_w, window_strides=(1, 1), padding="VALID",
        dimension_numbers=("NCHW", "OIHW", "NCHW"))
    y = y + pw_b[None, :, None, None]
    y = jnp.where(y > 0, y, alpha2 * y)
    return y


def init_params(key, inp, oup):
    k1, k2, k3, k4 = jax.random.split(key, 4)
    dw_w = jax.random.normal(k1, (inp, 1, 3, 3), jnp.float32) * 0.1   # groups=inp
    dw_b = jax.random.normal(k2, (inp,), jnp.float32) * 0.1
    alpha1 = jnp.full((1,), 0.25, jnp.float32)                        # PReLU default
    pw_w = jax.random.normal(k3, (oup, inp, 1, 1), jnp.float32) * 0.1
    pw_b = jax.random.normal(k4, (oup,), jnp.float32) * 0.1
    alpha2 = jnp.full((1,), 0.25, jnp.float32)
    return (dw_w, dw_b, alpha1, pw_w, pw_b, alpha2)


if __name__ == "__main__":
    N, INP, OUP, H, W, STRIDE = 2, 4, 8, 16, 16, 1   # inp != oup -> use_res False

    key = jax.random.PRNGKey(0)
    kx, kp = jax.random.split(key)
    x = jax.random.normal(kx, (N, INP, H, W), jnp.float32)
    params = init_params(kp, INP, OUP)

    out = jax.block_until_ready(depthwise_conv2d_forward(x, params, stride=STRIDE))
    ref = jax.block_until_ready(_reference(x, params, stride=STRIDE))

    assert out.shape == ref.shape, (out.shape, ref.shape)
    assert float(jnp.max(jnp.abs(out - ref))) < 1e-4

    print("KERNEL_OK")
</pallas_src>

<mosaic_0001>
module attributes {stable_mosaic.version = 11 : i64} {
  func.func @_dwconv_kernel(%arg0: i32, %arg1: i32, %arg2: memref<1x16x16x4xf32, #tpu.memory_space<vmem>>, %arg3: memref<9x4xf32, #tpu.memory_space<vmem>>, %arg4: memref<1x4xf32, #tpu.memory_space<vmem>>, %arg5: memref<4x8xf32, #tpu.memory_space<vmem>>, %arg6: memref<1x8xf32, #tpu.memory_space<vmem>>, %arg7: memref<1xf32, #tpu.memory_space<smem>>, %arg8: memref<1xf32, #tpu.memory_space<smem>>, %arg9: memref<1x7x14x8xf32, #tpu.memory_space<vmem>>) attributes {dimension_semantics = [#tpu.dimension_semantics<parallel>, #tpu.dimension_semantics<parallel>], iteration_bounds = array<i64: 2, 2>, scalar_prefetch = 0 : i64, scratch_operands = 0 : i64, tpu.core_type = #tpu.core_type<tc>, window_params = [{transform_indices = @transform_0, window_bounds = array<i64: 1, 16, 16, 4>}, {pipeline_mode = #tpu.pipeline_mode<synchronous>, transform_indices = @transform_1, window_bounds = array<i64: 9, 4>}, {pipeline_mode = #tpu.pipeline_mode<synchronous>, transform_indices = @transform_2, window_bounds = array<i64: 1, 4>}, {pipeline_mode = #tpu.pipeline_mode<synchronous>, transform_indices = @transform_3, window_bounds = array<i64: 4, 8>}, {pipeline_mode = #tpu.pipeline_mode<synchronous>, transform_indices = @transform_4, window_bounds = array<i64: 1, 8>}, {transform_indices = @transform_5, window_bounds = array<i64: 1>}, {transform_indices = @transform_6, window_bounds = array<i64: 1>}, {transform_indices = @transform_7, window_bounds = array<i64: 1, 7, 14, 8>}]} {
    %c7_i32 = arith.constant 7 : i32
    %0 = arith.muli %arg1, %c7_i32 : i32
    %c0 = arith.constant 0 : index
    %c0_0 = arith.constant 0 : index
    %1 = vector.load %arg3[%c0, %c0_0] : memref<9x4xf32, #tpu.memory_space<vmem>>, vector<9x4xf32>
    %c0_1 = arith.constant 0 : index
    %c0_2 = arith.constant 0 : index
    %2 = vector.load %arg4[%c0_1, %c0_2] : memref<1x4xf32, #tpu.memory_space<vmem>>, vector<1x4xf32>
    %3 = vector.shape_cast %2 : vector<1x4xf32> to vector<1x1x4xf32>
    %4 = vector.shape_cast %3 : vector<1x1x4xf32> to vector<1x1x4xf32>
    %5 = vector.broadcast %4 : vector<1x1x4xf32> to vector<7x14x4xf32>
    %c0_3 = arith.constant 0 : index
    %6 = arith.index_cast %0 : i32 to index
    %c0_4 = arith.constant 0 : index
    %c0_5 = arith.constant 0 : index
    %7 = vector.load %arg2[%c0_3, %6, %c0_4, %c0_5] : memref<1x16x16x4xf32, #tpu.memory_space<vmem>>, vector<1x9x14x4xf32>
    %8 = vector.shape_cast %7 : vector<1x9x14x4xf32> to vector<9x14x4xf32>
    %9 = vector.extract_strided_slice %8 {offsets = [0, 0, 0], sizes = [7, 14, 4], strides = [1, 1, 1]} : vector<9x14x4xf32> to vector<7x14x4xf32>
    %10 = vector.extract_strided_slice %1 {offsets = [0, 0], sizes = [1, 4], strides = [1, 1]} : vector<9x4xf32> to vector<1x4xf32>
    %11 = vector.shape_cast %10 : vector<1x4xf32> to vector<4xf32>
    %12 = vector.shape_cast %11 : vector<4xf32> to vector<1x1x4xf32>
    %13 = vector.broadcast %12 : vector<1x1x4xf32> to vector<7x14x4xf32>
    %14 = arith.mulf %9, %13 : vector<7x14x4xf32>
    %15 = arith.addf %5, %14 : vector<7x14x4xf32>
    %16 = vector.extract_strided_slice %8 {offsets = [1, 0, 0], sizes = [7, 14, 4], strides = [1, 1, 1]} : vector<9x14x4xf32> to vector<7x14x4xf32>
    %17 = vector.extract_strided_slice %1 {offsets = [3, 0], sizes = [1, 4], strides = [1, 1]} : vector<9x4xf32> to vector<1x4xf32>
    %18 = vector.shape_cast %17 : vector<1x4xf32> to vector<4xf32>
    %19 = vector.shape_cast %18 : vector<4xf32> to vector<1x1x4xf32>
    %20 = vector.broadcast %19 : vector<1x1x4xf32> to vector<7x14x4xf32>
    %21 = arith.mulf %16, %20 : vector<7x14x4xf32>
    %22 = arith.addf %15, %21 : vector<7x14x4xf32>
    %23 = vector.extract_strided_slice %8 {offsets = [2, 0, 0], sizes = [7, 14, 4], strides = [1, 1, 1]} : vector<9x14x4xf32> to vector<7x14x4xf32>
    %24 = vector.extract_strided_slice %1 {offsets = [6, 0], sizes = [1, 4], strides = [1, 1]} : vector<9x4xf32> to vector<1x4xf32>
    %25 = vector.shape_cast %24 : vector<1x4xf32> to vector<4xf32>
    %26 = vector.shape_cast %25 : vector<4xf32> to vector<1x1x4xf32>
    %27 = vector.broadcast %26 : vector<1x1x4xf32> to vector<7x14x4xf32>
    %28 = arith.mulf %23, %27 : vector<7x14x4xf32>
    %29 = arith.addf %22, %28 : vector<7x14x4xf32>
    %c0_6 = arith.constant 0 : index
    %30 = arith.index_cast %0 : i32 to index
    %c1 = arith.constant 1 : index
    %c0_7 = arith.constant 0 : index
    %31 = vector.load %arg2[%c0_6, %30, %c1, %c0_7] : memref<1x16x16x4xf32, #tpu.memory_space<vmem>>, vector<1x9x14x4xf32>
    %32 = vector.shape_cast %31 : vector<1x9x14x4xf32> to vector<9x14x4xf32>
    %33 = vector.extract_strided_slice %32 {offsets = [0, 0, 0], sizes = [7, 14, 4], strides = [1, 1, 1]} : vector<9x14x4xf32> to vector<7x14x4xf32>
    %34 = vector.extract_strided_slice %1 {offsets = [1, 0], sizes = [1, 4], strides = [1, 1]} : vector<9x4xf32> to vector<1x4xf32>
    %35 = vector.shape_cast %34 : vector<1x4xf32> to vector<4xf32>
    %36 = vector.shape_cast %35 : vector<4xf32> to vector<1x1x4xf32>
    %37 = vector.broadcast %36 : vector<1x1x4xf32> to vector<7x14x4xf32>
    %38 = arith.mulf %33, %37 : vector<7x14x4xf32>
    %39 = arith.addf %29, %38 : vector<7x14x4xf32>
    %40 = vector.extract_strided_slice %32 {offsets = [1, 0, 0], sizes = [7, 14, 4], strides = [1, 1, 1]} : vector<9x14x4xf32> to vector<7x14x4xf32>
    %41 = vector.extract_strided_slice %1 {offsets = [4, 0], sizes = [1, 4], strides = [1, 1]} : vector<9x4xf32> to vector<1x4xf32>
    %42 = vector.shape_cast %41 : vector<1x4xf32> to vector<4xf32>
    %43 = vector.shape_cast %42 : vector<4xf32> to vector<1x1x4xf32>
    %44 = vector.broadcast %43 : vector<1x1x4xf32> to vector<7x14x4xf32>
    %45 = arith.mulf %40, %44 : vector<7x14x4xf32>
    %46 = arith.addf %39, %45 : vector<7x14x4xf32>
    %47 = vector.extract_strided_slice %32 {offsets = [2, 0, 0], sizes = [7, 14, 4], strides = [1, 1, 1]} : vector<9x14x4xf32> to vector<7x14x4xf32>
    %48 = vector.extract_strided_slice %1 {offsets = [7, 0], sizes = [1, 4], strides = [1, 1]} : vector<9x4xf32> to vector<1x4xf32>
    %49 = vector.shape_cast %48 : vector<1x4xf32> to vector<4xf32>
    %50 = vector.shape_cast %49 : vector<4xf32> to vector<1x1x4xf32>
    %51 = vector.broadcast %50 : vector<1x1x4xf32> to vector<7x14x4xf32>
    %52 = arith.mulf %47, %51 : vector<7x14x4xf32>
    %53 = arith.addf %46, %52 : vector<7x14x4xf32>
    %c0_8 = arith.constant 0 : index
    %54 = arith.index_cast %0 : i32 to index
    %c2 = arith.constant 2 : index
    %c0_9 = arith.constant 0 : index
    %55 = vector.load %arg2[%c0_8, %54, %c2, %c0_9] : memref<1x16x16x4xf32, #tpu.memory_space<vmem>>, vector<1x9x14x4xf32>
    %56 = vector.shape_cast %55 : vector<1x9x14x4xf32> to vector<9x14x4xf32>
    %57 = vector.extract_strided_slice %56 {offsets = [0, 0, 0], sizes = [7, 14, 4], strides = [1, 1, 1]} : vector<9x14x4xf32> to vector<7x14x4xf32>
    %58 = vector.extract_strided_slice %1 {offsets = [2, 0], sizes = [1, 4], strides = [1, 1]} : vector<9x4xf32> to vector<1x4xf32>
    %59 = vector.shape_cast %58 : vector<1x4xf32> to vector<4xf32>
    %60 = vector.shape_cast %59 : vector<4xf32> to vector<1x1x4xf32>
    %61 = vector.broadcast %60 : vector<1x1x4xf32> to vector<7x14x4xf32>
    %62 = arith.mulf %57, %61 : vector<7x14x4xf32>
    %63 = arith.addf %53, %62 : vector<7x14x4xf32>
    %64 = vector.extract_strided_slice %56 {offsets = [1, 0, 0], sizes = [7, 14, 4], strides = [1, 1, 1]} : vector<9x14x4xf32> to vector<7x14x4xf32>
    %65 = vector.extract_strided_slice %1 {offsets = [5, 0], sizes = [1, 4], strides = [1, 1]} : vector<9x4xf32> to vector<1x4xf32>
    %66 = vector.shape_cast %65 : vector<1x4xf32> to vector<4xf32>
    %67 = vector.shape_cast %66 : vector<4xf32> to vector<1x1x4xf32>
    %68 = vector.broadcast %67 : vector<1x1x4xf32> to vector<7x14x4xf32>
    %69 = arith.mulf %64, %68 : vector<7x14x4xf32>
    %70 = arith.addf %63, %69 : vector<7x14x4xf32>
    %71 = vector.extract_strided_slice %56 {offsets = [2, 0, 0], sizes = [7, 14, 4], strides = [1, 1, 1]} : vector<9x14x4xf32> to vector<7x14x4xf32>
    %72 = vector.extract_strided_slice %1 {offsets = [8, 0], sizes = [1, 4], strides = [1, 1]} : vector<9x4xf32> to vector<1x4xf32>
    %73 = vector.shape_cast %72 : vector<1x4xf32> to vector<4xf32>
    %74 = vector.shape_cast %73 : vector<4xf32> to vector<1x1x4xf32>
    %75 = vector.broadcast %74 : vector<1x1x4xf32> to vector<7x14x4xf32>
    %76 = arith.mulf %71, %75 : vector<7x14x4xf32>
    %77 = arith.addf %70, %76 : vector<7x14x4xf32>
    %c0_10 = arith.constant 0 : index
    %78 = memref.load %arg7[%c0_10] : memref<1xf32, #tpu.memory_space<smem>>
    %cst = arith.constant 0.000000e+00 : f32
    %79 = vector.broadcast %cst : f32 to vector<7x14x4xf32>
    %80 = arith.cmpf ogt, %77, %79 : vector<7x14x4xf32>
    %81 = vector.broadcast %78 : f32 to vector<7x14x4xf32>
    %82 = arith.mulf %81, %77 : vector<7x14x4xf32>
    %83 = arith.select %80, %77, %82 : vector<7x14x4xi1>, vector<7x14x4xf32>
    %c0_11 = arith.constant 0 : index
    %c0_12 = arith.constant 0 : index
    %84 = vector.load %arg5[%c0_11, %c0_12] : memref<4x8xf32, #tpu.memory_space<vmem>>, vector<4x8xf32>
    %c0_13 = arith.constant 0 : index
    %c0_14 = arith.constant 0 : index
    %85 = vector.load %arg6[%c0_13, %c0_14] : memref<1x8xf32, #tpu.memory_space<vmem>>, vector<1x8xf32>
    %86 = vector.shape_cast %85 : vector<1x8xf32> to vector<1x1x8xf32>
    %87 = vector.shape_cast %86 : vector<1x1x8xf32> to vector<1x1x8xf32>
    %88 = vector.broadcast %87 : vector<1x1x8xf32> to vector<7x14x8xf32>
    %89 = vector.extract_strided_slice %83 {offsets = [0, 0, 0], sizes = [7, 14, 1], strides = [1, 1, 1]} : vector<7x14x4xf32> to vector<7x14x1xf32>
    %90 = vector.extract_strided_slice %84 {offsets = [0, 0], sizes = [1, 8], strides = [1, 1]} : vector<4x8xf32> to vector<1x8xf32>
    %91 = vector.shape_cast %90 : vector<1x8xf32> to vector<1x1x8xf32>
    %92 = vector.broadcast %89 : vector<7x14x1xf32> to vector<7x14x8xf32>
    %93 = vector.broadcast %91 : vector<1x1x8xf32> to vector<7x14x8xf32>
    %94 = arith.mulf %92, %93 : vector<7x14x8xf32>
    %95 = arith.addf %88, %94 : vector<7x14x8xf32>
    %96 = vector.extract_strided_slice %83 {offsets = [0, 0, 1], sizes = [7, 14, 1], strides = [1, 1, 1]} : vector<7x14x4xf32> to vector<7x14x1xf32>
    %97 = vector.extract_strided_slice %84 {offsets = [1, 0], sizes = [1, 8], strides = [1, 1]} : vector<4x8xf32> to vector<1x8xf32>
    %98 = vector.shape_cast %97 : vector<1x8xf32> to vector<1x1x8xf32>
    %99 = vector.broadcast %96 : vector<7x14x1xf32> to vector<7x14x8xf32>
    %100 = vector.broadcast %98 : vector<1x1x8xf32> to vector<7x14x8xf32>
    %101 = arith.mulf %99, %100 : vector<7x14x8xf32>
    %102 = arith.addf %95, %101 : vector<7x14x8xf32>
    %103 = vector.extract_strided_slice %83 {offsets = [0, 0, 2], sizes = [7, 14, 1], strides = [1, 1, 1]} : vector<7x14x4xf32> to vector<7x14x1xf32>
    %104 = vector.extract_strided_slice %84 {offsets = [2, 0], sizes = [1, 8], strides = [1, 1]} : vector<4x8xf32> to vector<1x8xf32>
    %105 = vector.shape_cast %104 : vector<1x8xf32> to vector<1x1x8xf32>
    %106 = vector.broadcast %103 : vector<7x14x1xf32> to vector<7x14x8xf32>
    %107 = vector.broadcast %105 : vector<1x1x8xf32> to vector<7x14x8xf32>
    %108 = arith.mulf %106, %107 : vector<7x14x8xf32>
    %109 = arith.addf %102, %108 : vector<7x14x8xf32>
    %110 = vector.extract_strided_slice %83 {offsets = [0, 0, 3], sizes = [7, 14, 1], strides = [1, 1, 1]} : vector<7x14x4xf32> to vector<7x14x1xf32>
    %111 = vector.extract_strided_slice %84 {offsets = [3, 0], sizes = [1, 8], strides = [1, 1]} : vector<4x8xf32> to vector<1x8xf32>
    %112 = vector.shape_cast %111 : vector<1x8xf32> to vector<1x1x8xf32>
    %113 = vector.broadcast %110 : vector<7x14x1xf32> to vector<7x14x8xf32>
    %114 = vector.broadcast %112 : vector<1x1x8xf32> to vector<7x14x8xf32>
    %115 = arith.mulf %113, %114 : vector<7x14x8xf32>
    %116 = arith.addf %109, %115 : vector<7x14x8xf32>
    %c0_15 = arith.constant 0 : index
    %117 = memref.load %arg8[%c0_15] : memref<1xf32, #tpu.memory_space<smem>>
    %cst_16 = arith.constant 0.000000e+00 : f32
    %118 = vector.broadcast %cst_16 : f32 to vector<7x14x8xf32>
    %119 = arith.cmpf ogt, %116, %118 : vector<7x14x8xf32>
    %120 = vector.broadcast %117 : f32 to vector<7x14x8xf32>
    %121 = arith.mulf %120, %116 : vector<7x14x8xf32>
    %122 = arith.select %119, %116, %121 : vector<7x14x8xi1>, vector<7x14x8xf32>
    %c0_17 = arith.constant 0 : index
    %c0_18 = arith.constant 0 : index
    %c0_19 = arith.constant 0 : index
    %c0_20 = arith.constant 0 : index
    %123 = vector.load %arg9[%c0_17, %c0_18, %c0_19, %c0_20] : memref<1x7x14x8xf32, #tpu.memory_space<vmem>>, vector<1x7x14x8xf32>
    %124 = vector.shape_cast %123 : vector<1x7x14x8xf32> to vector<7x14x8xf32>
    %125 = vector.shape_cast %122 : vector<7x14x8xf32> to vector<1x7x14x8xf32>
    tpu.vector_store %arg9[%c0_17, %c0_18, %c0_19, %c0_20], %125 {strides = array<i32>} : memref<1x7x14x8xf32, #tpu.memory_space<vmem>>, vector<1x7x14x8xf32>,
    return
  }
  func.func @transform_0(%arg0: i32, %arg1: i32) -> (i32, i32, i32, i32) {
    %c0_i32 = arith.constant 0 : i32
    %c0_i32_0 = arith.constant 0 : i32
    %c0_i32_1 = arith.constant 0 : i32
    %c0_i32_2 = arith.constant 0 : i32
    return %arg0, %c0_i32, %c0_i32_0, %c0_i32_1 : i32, i32, i32, i32
  }
  func.func @transform_1(%arg0: i32, %arg1: i32) -> (i32, i32) {
    %c0_i32 = arith.constant 0 : i32
    %c0_i32_0 = arith.constant 0 : i32
    %c0_i32_1 = arith.constant 0 : i32
    return %c0_i32, %c0_i32_0 : i32, i32
  }
  func.func @transform_2(%arg0: i32, %arg1: i32) -> (i32, i32) {
    %c0_i32 = arith.constant 0 : i32
    %c0_i32_0 = arith.constant 0 : i32
    %c0_i32_1 = arith.constant 0 : i32
    return %c0_i32, %c0_i32_0 : i32, i32
  }
  func.func @transform_3(%arg0: i32, %arg1: i32) -> (i32, i32) {
    %c0_i32 = arith.constant 0 : i32
    %c0_i32_0 = arith.constant 0 : i32
    %c0_i32_1 = arith.constant 0 : i32
    return %c0_i32, %c0_i32_0 : i32, i32
  }
  func.func @transform_4(%arg0: i32, %arg1: i32) -> (i32, i32) {
    %c0_i32 = arith.constant 0 : i32
    %c0_i32_0 = arith.constant 0 : i32
    %c0_i32_1 = arith.constant 0 : i32
    return %c0_i32, %c0_i32_0 : i32, i32
  }
  func.func @transform_5(%arg0: i32, %arg1: i32) -> i32 {
    %c0_i32 = arith.constant 0 : i32
    %c0_i32_0 = arith.constant 0 : i32
    return %c0_i32 : i32
  }
  func.func @transform_6(%arg0: i32, %arg1: i32) -> i32 {
    %c0_i32 = arith.constant 0 : i32
    %c0_i32_0 = arith.constant 0 : i32
    return %c0_i32 : i32
  }
  func.func @transform_7(%arg0: i32, %arg1: i32) -> (i32, i32, i32, i32) {
    %c0_i32 = arith.constant 0 : i32
    %c0_i32_0 = arith.constant 0 : i32
    %c0_i32_1 = arith.constant 0 : i32
    return %arg0, %arg1, %c0_i32, %c0_i32_0 : i32, i32, i32, i32
  }
}

</mosaic_0001>

<llo_original>
// kernel: tpu_custom_call.1
$region0: #{tpu_custom_call.1}
  #allocation0 [shape = 'u32[]', space=smem, size = 0x4, offset = 0x4, fixed_abs, tag = 'smem constant byte address 0x4 - core index']
  #allocation1 [shape = 'u32[144,128]{1,0:T(1,128)}', space=vmem, size = 0x12000, scoped, tag = 'internal scratch']
  #allocation2 [shape = 'f32[1]{0:T(128)S(6)}', space=smem, size = 0x200, scoped, tag = 'scoped memory for tpu_custom_call.1']
  #allocation3 [shape = 'f32[1]{0:T(128)S(6)}', space=smem, size = 0x200, scoped, tag = 'scoped memory for tpu_custom_call.1']
  %s0 = inlined_call_operand.vmem [shape: f32[2,16,16,4], index: 0, kind: input, shape index: {}]
  %s1 = inlined_call_operand.vmem [shape: f32[9,4], index: 1, kind: input, shape index: {}]
  %s2 = inlined_call_operand.vmem [shape: f32[1,4], index: 2, kind: input, shape index: {}]
  %s3 = inlined_call_operand.vmem [shape: f32[4,8], index: 3, kind: input, shape index: {}]
  %s4 = inlined_call_operand.vmem [shape: f32[1,8], index: 4, kind: input, shape index: {}]
  %s5 = inlined_call_operand.<no memory space> [shape: f32[1], index: 5, kind: input, shape index: {}]
  %s6 = inlined_call_operand.<no memory space> [shape: f32[1], index: 6, kind: input, shape index: {}]
  %s7 = inlined_call_operand.vmem [shape: f32[2,14,14,8], index: 7, kind: output, shape index: {}]
  %s8 = sld [smem:[#allocation0]]
  $region61: #{tpu_custom_call.1} parent=0
    _
  %s10 = ssub.s32 1, %s8
  %s11 = scalar_select 0, %s10, %s8
  %12 = sst [smem:[#allocation2]] %s5
  %13 = sst [smem:[#allocation3]] %s6
  loop: start=0, step=1, limit=6
  $region2: #{tpu_custom_call.1} parent=0 // loop_pre_header
    _
  $region3: #{tpu_custom_call.1} parent=0 // loop_header
    %s15 = sphi 0, %s19
    %p16 = scmp.ge.s32.totalorder %s15, 6
    %s22 = sphi 0, %s34
    %s23 = sphi 0, %s30
    %s24 = sphi 0, %s22
    %s25 = sphi 0, %s23
    %s26 = sphi 0, %s24
    %s27 = sphi 0, %s25
    %s37 = sphi 0, %s39
    %s40 = sphi 0, %s37
    %s41 = sphi 0, %s40
    %s57 = sphi 0, %s41
    %s61 = sphi 0, %s61
    %s63 = sphi 0, %s61
    %s64 = sphi 0, %s63
    %s78 = sphi 0, %s64
    %s82 = sphi 0, %s82
    %s84 = sphi 0, %s82
    %s85 = sphi 0, %s84
    %s99 = sphi 0, %s85
    %s103 = sphi 0, %s103
    %s105 = sphi 0, %s103
    %s106 = sphi 0, %s105
    %s120 = sphi 0, %s106
    %s124 = sphi 0, %s124
    %s126 = sphi 0, %s124
    %s127 = sphi 0, %s126
    %s141 = sphi 0, %s127
    %s145 = sphi 0, %s145
    %s147 = sphi 0, %s145
    %s148 = sphi 0, %s147
    %s162 = sphi 0, %s148
    %s166 = sphi 0, %s166
    %s168 = sphi 0, %s166
    %s169 = sphi 0, %s168
    %s183 = sphi 0, %s169
    %s191 = sphi 0, %s193
    %s194 = sphi 0, %s191
    %s195 = sphi 0, %s194
    %s211 = sphi 0, %s195
  $region4: #{tpu_custom_call.1} parent=0 // loop_header_branch
    %18 = sbr.rel (%p16) target = $region8
  $region5: #{tpu_custom_call.1} parent=0 // loop_body
    %s20 = ssub.s32 %s15, 1
    %s21 = ssub.s32 %s15, 2
    %s28 = sadd.s32 1, %s23
    %p29 = scmp.ge.s32.totalorder %s28, 2
    %s30 = scalar_select %p29, 0, %s28
    %s31 = sadd.s32 1, %s22
    %s32 = scalar_select %p29, %s31, %s22
    %p33 = scmp.ge.s32.totalorder %s32, 2
    %s34 = scalar_select %p33, 0, %s32
    %s35 = ssub.s32 %s22, %s34
    %p36 = scmp.eq.s32.totalorder %s35, 0
    %s38 = sadd.s32 %s37, 1
    %s39 = scalar_select %p36, %s37, %s38
    %p42 = pneg %p36
    %p43 = scmp.eq.s32.totalorder %s15, 3
    %p44 = por %p42, %p43
    %p45 = scmp.ne.s32.totalorder %s37, %s40
    %p46 = scmp.eq.s32.totalorder %s15, 0
    %p47 = por %p45, %p46
    %p48 = scmp.ne.s32.totalorder %s37, %s40
    %p49 = scmp.eq.s32.totalorder %s20, 3
    %p50 = por %p48, %p49
    %p51 = scmp.ne.s32.totalorder %s40, %s41
    %p52 = scmp.eq.s32.totalorder %s20, 0
    %p53 = por %p51, %p52
    %p54 = scmp.ne.s32.totalorder %s40, %s41
    %p55 = scmp.eq.s32.totalorder %s21, 3
    %p56 = por %p54, %p55
    %p58 = scmp.ne.s32.totalorder %s41, %s57
    %p59 = scmp.eq.s32.totalorder %s21, 0
    %p60 = por %p58, %p59
    %s62 = sadd.s32 %s61, 1
    %p65 = scmp.eq.s32.totalorder %s15, 3
    %p66 = scmp.ne.s32.totalorder %s61, %s63
    %p67 = scmp.eq.s32.totalorder %s15, 0
    %p68 = por %p66, %p67
    %p69 = scmp.ne.s32.totalorder %s61, %s63
    %p70 = scmp.eq.s32.totalorder %s20, 3
    %p71 = por %p69, %p70
    %p72 = scmp.ne.s32.totalorder %s63, %s64
    %p73 = scmp.eq.s32.totalorder %s20, 0
    %p74 = por %p72, %p73
    %p75 = scmp.ne.s32.totalorder %s63, %s64
    %p76 = scmp.eq.s32.totalorder %s21, 3
    %p77 = por %p75, %p76
    %p79 = scmp.ne.s32.totalorder %s64, %s78
    %p80 = scmp.eq.s32.totalorder %s21, 0
    %p81 = por %p79, %p80
    %s83 = sadd.s32 %s82, 1
    %p86 = scmp.eq.s32.totalorder %s15, 3
    %p87 = scmp.ne.s32.totalorder %s82, %s84
    %p88 = scmp.eq.s32.totalorder %s15, 0
    %p89 = por %p87, %p88
    %p90 = scmp.ne.s32.totalorder %s82, %s84
    %p91 = scmp.eq.s32.totalorder %s20, 3
    %p92 = por %p90, %p91
    %p93 = scmp.ne.s32.totalorder %s84, %s85
    %p94 = scmp.eq.s32.totalorder %s20, 0
    %p95 = por %p93, %p94
    %p96 = scmp.ne.s32.totalorder %s84, %s85
    %p97 = scmp.eq.s32.totalorder %s21, 3
    %p98 = por %p96, %p97
    %p100 = scmp.ne.s32.totalorder %s85, %s99
    %p101 = scmp.eq.s32.totalorder %s21, 0
    %p102 = por %p100, %p101
    %s104 = sadd.s32 %s103, 1
    %p107 = scmp.eq.s32.totalorder %s15, 3
    %p108 = scmp.ne.s32.totalorder %s103, %s105
    %p109 = scmp.eq.s32.totalorder %s15, 0
    %p110 = por %p108, %p109
    %p111 = scmp.ne.s32.totalorder %s103, %s105
    %p112 = scmp.eq.s32.totalorder %s20, 3
    %p113 = por %p111, %p112
    %p114 = scmp.ne.s32.totalorder %s105, %s106
    %p115 = scmp.eq.s32.totalorder %s20, 0
    %p116 = por %p114, %p115
    %p117 = scmp.ne.s32.totalorder %s105, %s106
    %p118 = scmp.eq.s32.totalorder %s21, 3
    %p119 = por %p117, %p118
    %p121 = scmp.ne.s32.totalorder %s106, %s120
    %p122 = scmp.eq.s32.totalorder %s21, 0
    %p123 = por %p121, %p122
    %s125 = sadd.s32 %s124, 1
    %p128 = scmp.eq.s32.totalorder %s15, 3
    %p129 = scmp.ne.s32.totalorder %s124, %s126
    %p130 = scmp.eq.s32.totalorder %s15, 0
    %p131 = por %p129, %p130
    %p132 = scmp.ne.s32.totalorder %s124, %s126
    %p133 = scmp.eq.s32.totalorder %s20, 3
    %p134 = por %p132, %p133
    %p135 = scmp.ne.s32.totalorder %s126, %s127
    %p136 = scmp.eq.s32.totalorder %s20, 0
    %p137 = por %p135, %p136
    %p138 = scmp.ne.s32.totalorder %s126, %s127
    %p139 = scmp.eq.s32.totalorder %s21, 3
    %p140 = por %p138, %p139
    %p142 = scmp.ne.s32.totalorder %s127, %s141
    %p143 = scmp.eq.s32.totalorder %s21, 0
    %p144 = por %p142, %p143
    %s146 = sadd.s32 %s145, 1
    %p149 = scmp.eq.s32.totalorder %s15, 3
    %p150 = scmp.ne.s32.totalorder %s145, %s147
    %p151 = scmp.eq.s32.totalorder %s15, 0
    %p152 = por %p150, %p151
    %p153 = scmp.ne.s32.totalorder %s145, %s147
    %p154 = scmp.eq.s32.totalorder %s20, 3
    %p155 = por %p153, %p154
    %p156 = scmp.ne.s32.totalorder %s147, %s148
    %p157 = scmp.eq.s32.totalorder %s20, 0
    %p158 = por %p156, %p157
    %p159 = scmp.ne.s32.totalorder %s147, %s148
    %p160 = scmp.eq.s32.totalorder %s21, 3
    %p161 = por %p159, %p160
    %p163 = scmp.ne.s32.totalorder %s148, %s162
    %p164 = scmp.eq.s32.totalorder %s21, 0
    %p165 = por %p163, %p164
    %s167 = sadd.s32 %s166, 1
    %p170 = scmp.eq.s32.totalorder %s15, 3
    %p171 = scmp.ne.s32.totalorder %s166, %s168
    %p172 = scmp.eq.s32.totalorder %s15, 0
    %p173 = por %p171, %p172
    %p174 = scmp.ne.s32.totalorder %s166, %s168
    %p175 = scmp.eq.s32.totalorder %s20, 3
    %p176 = por %p174, %p175
    %p177 = scmp.ne.s32.totalorder %s168, %s169
    %p178 = scmp.eq.s32.totalorder %s20, 0
    %p179 = por %p177, %p178
    %p180 = scmp.ne.s32.totalorder %s168, %s169
    %p181 = scmp.eq.s32.totalorder %s21, 3
    %p182 = por %p180, %p181
    %p184 = scmp.ne.s32.totalorder %s169, %s183
    %p185 = scmp.eq.s32.totalorder %s21, 0
    %p186 = por %p184, %p185
    %s187 = ssub.s32 %s22, %s34
    %s188 = ssub.s32 %s23, %s30
    %s189 = sor.u32 %s187, %s188
    %p190 = scmp.eq.s32.totalorder %s189, 0
    %s192 = sadd.s32 %s191, 1
    %s193 = scalar_select %p190, %s191, %s192
    %p196 = pneg %p190
    %p197 = scmp.eq.s32.totalorder %s15, 3
    %p198 = por %p196, %p197
    %p199 = scmp.ne.s32.totalorder %s191, %s194
    %p200 = scmp.eq.s32.totalorder %s15, 0
    %p201 = por %p199, %p200
    %p202 = scmp.ne.s32.totalorder %s191, %s194
    %p203 = scmp.eq.s32.totalorder %s20, 3
    %p204 = por %p202, %p203
    %p205 = scmp.ne.s32.totalorder %s194, %s195
    %p206 = scmp.eq.s32.totalorder %s20, 0
    %p207 = por %p205, %p206
    %p208 = scmp.ne.s32.totalorder %s194, %s195
    %p209 = scmp.eq.s32.totalorder %s21, 3
    %p210 = por %p208, %p209
    %p212 = scmp.ne.s32.totalorder %s195, %s211
    %p213 = scmp.eq.s32.totalorder %s21, 0
    %p214 = por %p212, %p213
    %p215 = scmp.le.s32.totalorder 1, %s15
    %p216 = scmp.lt.s32.totalorder %s15, 5
    %p217 = pnand %p215, %p216
    %p218 = pneg %p217
    // Predicated region
    $region9: #{tpu_custom_call.1} parent=5 // pred_check
      _
    $region10: #{tpu_custom_call.1} parent=5 // pred_check_branch
      %220 = sbr.rel (%p217) target = $region12
    $region11: #{tpu_custom_call.1} parent=5 // pred_region
      %s221 = ssub.s32 %s15, 1
      // Predicated region
      $region13: #{tpu_custom_call.1} parent=11 // pred_check
        %p222 = pneg %p74
      $region14: #{tpu_custom_call.1} parent=11 // pred_check_branch
        %224 = sbr.rel (%p222) target = $region16
      $region15: #{tpu_custom_call.1} parent=11 // pred_region
        _
      $region16: #{tpu_custom_call.1} parent=11 // pred_fallthru
        _
      // Predicated region
      $region17: #{tpu_custom_call.1} parent=11 // pred_check
        %p225 = pneg %p95
      $region18: #{tpu_custom_call.1} parent=11 // pred_check_branch
        %227 = sbr.rel (%p225) target = $region20
      $region19: #{tpu_custom_call.1} parent=11 // pred_region
        _
      $region20: #{tpu_custom_call.1} parent=11 // pred_fallthru
        _
      // Predicated region
      $region21: #{tpu_custom_call.1} parent=11 // pred_check
        %p228 = pneg %p116
      $region22: #{tpu_custom_call.1} parent=11 // pred_check_branch
        %230 = sbr.rel (%p228) target = $region24
      $region23: #{tpu_custom_call.1} parent=11 // pred_region
        _
      $region24: #{tpu_custom_call.1} parent=11 // pred_fallthru
        _
      // Predicated region
      $region25: #{tpu_custom_call.1} parent=11 // pred_check
        %p231 = pneg %p137
      $region26: #{tpu_custom_call.1} parent=11 // pred_check_branch
        %233 = sbr.rel (%p231) target = $region28
      $region27: #{tpu_custom_call.1} parent=11 // pred_region
        _
      $region28: #{tpu_custom_call.1} parent=11 // pred_fallthru
        _
      // Predicated region
      $region29: #{tpu_custom_call.1} parent=11 // pred_check
        %p234 = pneg %p158
      $region30: #{tpu_custom_call.1} parent=11 // pred_check_branch
        %236 = sbr.rel (%p234) target = $region32
      $region31: #{tpu_custom_call.1} parent=11 // pred_region
        _
      $region32: #{tpu_custom_call.1} parent=11 // pred_fallthru
        _
      // Predicated region
      $region33: #{tpu_custom_call.1} parent=11 // pred_check
        %p237 = pneg %p179
      $region34: #{tpu_custom_call.1} parent=11 // pred_check_branch
        %239 = sbr.rel (%p237) target = $region36
      $region35: #{tpu_custom_call.1} parent=11 // pred_region
        _
      $region36: #{tpu_custom_call.1} parent=11 // pred_fallthru
        _
    $region12: #{tpu_custom_call.1} parent=5 // pred_fallthru
      _
    %p240 = scmp.lt.s32.totalorder %s15, 4
    // Predicated region
    $region37: #{tpu_custom_call.1} parent=5 // pred_check
      %p241 = pneg %p240
    $region38: #{tpu_custom_call.1} parent=5 // pred_check_branch
      %243 = sbr.rel (%p241) target = $region40
    $region39: #{tpu_custom_call.1} parent=5 // pred_region
      // Predicated region
      $region41: #{tpu_custom_call.1} parent=39 // pred_check
        %p244 = pneg %p47
      $region42: #{tpu_custom_call.1} parent=39 // pred_check_branch
        %246 = sbr.rel (%p244) target = $region44
      $region43: #{tpu_custom_call.1} parent=39 // pred_region
        %p247 = scmp.lt.s32.totalorder %s22, 1
        %s248 = scalar_select %p247, %s22, 1
        %s249 = smul.addr %s248, 32
        %s250 = smul.addr %s249, 8
        %s251 = scalar_lea.vmem %s0, %s250
      $region44: #{tpu_custom_call.1} parent=39 // pred_fallthru
        _
    $region40: #{tpu_custom_call.1} parent=5 // pred_fallthru
      _
    %p252 = scmp.le.s32.totalorder 1, %s15
    %p253 = scmp.lt.s32.totalorder %s15, 5
    %p254 = pnand %p252, %p253
    %p255 = pneg %p254
    // Predicated region
    $region45: #{tpu_custom_call.1} parent=5 // pred_check
      _
    $region46: #{tpu_custom_call.1} parent=5 // pred_check_branch
      %257 = sbr.rel (%p254) target = $region48
    $region47: #{tpu_custom_call.1} parent=5 // pred_region
      %s258 = ssub.s32 %s15, 1
      %p259 = scmp.lt.s32.totalorder %s24, 1
      %s260 = scalar_select %p259, %s24, 1
      %s261 = smul.addr %s260, 32
      %s262 = smul.addr %s261, 8
      %s263 = scalar_lea.vmem %s0, %s262
      %p264 = pneg %p53
      %p265 = pneg %p50
      %p266 = pneg %p74
      %p267 = pneg %p71
      %p268 = pneg %p95
      %p269 = pneg %p92
      %p270 = pneg %p116
      %p271 = pneg %p113
      %p272 = pneg %p137
      %p273 = pneg %p134
      %p274 = pneg %p158
      %p275 = pneg %p155
      %p276 = pneg %p179
      %p277 = pneg %p176
      %p278 = pneg %p207
      %p279 = pneg %p204
      %s280 = smul.u32 7, %s25
      %p281 = scmp.lt.s32.totalorder %s24, 1
      %s282 = scalar_select %p281, %s24, 1
      %p283 = scmp.lt.s32.totalorder %s280, 13
      %s284 = scalar_select %p283, %s280, 13
      %s285 = smul.addr %s284, 2
      %s286 = smul.addr %s282, 28
      %s287 = sadd.s32 %s285, %s286
      %s288 = smul.addr %s287, 8
      %s289 = scalar_lea.vmem %s7, %s288
      %p290 = scmp.lt.s32.totalorder %s24, 1
      %s291 = scalar_select %p290, %s24, 1
      %s292 = smul.addr %s291, 32
      %s293 = smul.addr %s292, 8
      %s294 = scalar_lea.vmem %s0, %s293
      %s295 = smul.u32 7, %s25
      %p296 = scmp.lt.s32.totalorder %s24, 1
      %s297 = scalar_select %p296, %s24, 1
      %p298 = scmp.lt.s32.totalorder %s295, 13
      %s299 = scalar_select %p298, %s295, 13
      %s300 = smul.addr %s299, 2
      %s301 = smul.addr %s297, 28
      %s302 = sadd.s32 %s300, %s301
      %s303 = smul.addr %s302, 8
      %s304 = scalar_lea.vmem %s7, %s303
      %s305 = smul.u32 7, %s25
      %s306 = smul.u32 %s25, 7
      %v307 = vld [vmem:[%s1] sm:$0xff]
      %v308 = vld [vmem:[%s1 + $0x8] sm:$0x1]
      %v309 = vld [vmem:[%s2] sm:$0x1]
      %v311 = vlaneseq
      %v312 = vshrl.u32 %v311, 7
      %v313 = vsub.s32 0, %v312
      %v314 = vrot.slane %v309, %v313
      %s316 = smul.u32 %s306, 16
      %s317 = scalar_lea.vmem %s294, %s316
      %v318 = vld [vmem:[%s317] sm:$0xff]
      %v319 = vld [vmem:[%s317 + $0x8] sm:$0x3f]
      %v320 = vld [vmem:[%s317 + $0x10] sm:$0xff]
      %v321 = vld [vmem:[%s317 + $0x18] sm:$0x3f]
      %v322 = vld [vmem:[%s317 + $0x20] sm:$0xff]
      %v323 = vld [vmem:[%s317 + $0x28] sm:$0x3f]
      %v324 = vld [vmem:[%s317 + $0x30] sm:$0xff]
      %v325 = vld [vmem:[%s317 + $0x38] sm:$0x3f]
      %v326 = vld [vmem:[%s317 + $0x40] sm:$0xff]
      %v327 = vld [vmem:[%s317 + $0x48] sm:$0x3f]
      %v328 = vld [vmem:[%s317 + $0x50] sm:$0xff]
      %v329 = vld [vmem:[%s317 + $0x58] sm:$0x3f]
      %v330 = vld [vmem:[%s317 + $0x60] sm:$0xff]
      %v331 = vld [vmem:[%s317 + $0x68] sm:$0x3f]
      %v332 = vld [vmem:[%s317 + $0x70] sm:$0xff]
      %v333 = vld [vmem:[%s317 + $0x78] sm:$0x3f]
      %v334 = vld [vmem:[%s317 + $0x80] sm:$0xff]
      %v335 = vld [vmem:[%s317 + $0x88] sm:$0x3f]
      %v336 = vlaneseq
      %v337 = vshrl.u32 %v336, 7
      %v338 = vsub.s32 0, %v337
      %v339 = vrot.slane %v307, %v338
      %v340 = vmul.f32 %v318, %v339
      %v341 = vmul.f32 %v319, %v339
      %v342 = vmul.f32 %v320, %v339
      %v343 = vmul.f32 %v321, %v339
      %v344 = vmul.f32 %v322, %v339
      %v345 = vmul.f32 %v323, %v339
      %v346 = vmul.f32 %v324, %v339
      %v347 = vmul.f32 %v325, %v339
      %v348 = vmul.f32 %v326, %v339
      %v349 = vmul.f32 %v327, %v339
      %v350 = vmul.f32 %v328, %v339
      %v351 = vmul.f32 %v329, %v339
      %v352 = vmul.f32 %v330, %v339
      %v353 = vmul.f32 %v331, %v339
      %v354 = vadd.f32 %v314, %v340
      %v355 = vadd.f32 %v314, %v341
      %v356 = vadd.f32 %v314, %v342
      %v357 = vadd.f32 %v314, %v343
      %v358 = vadd.f32 %v314, %v344
      %v359 = vadd.f32 %v314, %v345
      %v360 = vadd.f32 %v314, %v346
      %v361 = vadd.f32 %v314, %v347
      %v362 = vadd.f32 %v314, %v348
      %v363 = vadd.f32 %v314, %v349
      %v364 = vadd.f32 %v314, %v350
      %v365 = vadd.f32 %v314, %v351
      %v366 = vadd.f32 %v314, %v352
      %v367 = vadd.f32 %v314, %v353
      %v368 = vlaneseq
      %v369 = vshrl.u32 %v368, 7
      %v370 = vsub.s32 3, %v369
      %v371 = vrot.slane %v307, %v370
      %v372 = vmul.f32 %v320, %v371
      %v373 = vmul.f32 %v321, %v371
      %v374 = vmul.f32 %v322, %v371
      %v375 = vmul.f32 %v323, %v371
      %v376 = vmul.f32 %v324, %v371
      %v377 = vmul.f32 %v325, %v371
      %v378 = vmul.f32 %v326, %v371
      %v379 = vmul.f32 %v327, %v371
      %v380 = vmul.f32 %v328, %v371
      %v381 = vmul.f32 %v329, %v371
      %v382 = vmul.f32 %v330, %v371
      %v383 = vmul.f32 %v331, %v371
      %v384 = vmul.f32 %v332, %v371
      %v385 = vmul.f32 %v333, %v371
      %v386 = vadd.f32 %v354, %v372
      %v387 = vadd.f32 %v355, %v373
      %v388 = vadd.f32 %v356, %v374
      %v389 = vadd.f32 %v357, %v375
      %v390 = vadd.f32 %v358, %v376
      %v391 = vadd.f32 %v359, %v377
      %v392 = vadd.f32 %v360, %v378
      %v393 = vadd.f32 %v361, %v379
      %v394 = vadd.f32 %v362, %v380
      %v395 = vadd.f32 %v363, %v381
      %v396 = vadd.f32 %v364, %v382
      %v397 = vadd.f32 %v365, %v383
      %v398 = vadd.f32 %v366, %v384
      %v399 = vadd.f32 %v367, %v385
      %v400 = vlaneseq
      %v401 = vshrl.u32 %v400, 7
      %v402 = vsub.s32 6, %v401
      %v403 = vrot.slane %v307, %v402
      %v404 = vmul.f32 %v322, %v403
      %v405 = vmul.f32 %v323, %v403
      %v406 = vmul.f32 %v324, %v403
      %v407 = vmul.f32 %v325, %v403
      %v408 = vmul.f32 %v326, %v403
      %v409 = vmul.f32 %v327, %v403
      %v410 = vmul.f32 %v328, %v403
      %v411 = vmul.f32 %v329, %v403
      %v412 = vmul.f32 %v330, %v403
      %v413 = vmul.f32 %v331, %v403
      %v414 = vmul.f32 %v332, %v403
      %v415 = vmul.f32 %v333, %v403
      %v416 = vmul.f32 %v334, %v403
      %v417 = vmul.f32 %v335, %v403
      %v418 = vadd.f32 %v386, %v404
      %v419 = vadd.f32 %v387, %v405
      %v420 = vadd.f32 %v388, %v406
      %v421 = vadd.f32 %v389, %v407
      %v422 = vadd.f32 %v390, %v408
      %v423 = vadd.f32 %v391, %v409
      %v424 = vadd.f32 %v392, %v410
      %v425 = vadd.f32 %v393, %v411
      %v426 = vadd.f32 %v394, %v412
      %v427 = vadd.f32 %v395, %v413
      %v428 = vadd.f32 %v396, %v414
      %v429 = vadd.f32 %v397, %v415
      %v430 = vadd.f32 %v398, %v416
      %v431 = vadd.f32 %v399, %v417
      %v432 = vld [vmem:[%s317 + $0x1] sm:$0xff]
      %v433 = vld [vmem:[%s317 + $0x9] sm:$0x3f]
      %v434 = vld [vmem:[%s317 + $0x11] sm:$0xff]
      %v435 = vld [vmem:[%s317 + $0x19] sm:$0x3f]
      %v436 = vld [vmem:[%s317 + $0x21] sm:$0xff]
      %v437 = vld [vmem:[%s317 + $0x29] sm:$0x3f]
      %v438 = vld [vmem:[%s317 + $0x31] sm:$0xff]
      %v439 = vld [vmem:[%s317 + $0x39] sm:$0x3f]
      %v440 = vld [vmem:[%s317 + $0x41] sm:$0xff]
      %v441 = vld [vmem:[%s317 + $0x49] sm:$0x3f]
      %v442 = vld [vmem:[%s317 + $0x51] sm:$0xff]
      %v443 = vld [vmem:[%s317 + $0x59] sm:$0x3f]
      %v444 = vld [vmem:[%s317 + $0x61] sm:$0xff]
      %v445 = vld [vmem:[%s317 + $0x69] sm:$0x3f]
      %v446 = vld [vmem:[%s317 + $0x71] sm:$0xff]
      %v447 = vld [vmem:[%s317 + $0x79] sm:$0x3f]
      %v448 = vld [vmem:[%s317 + $0x81] sm:$0xff]
      %v449 = vld [vmem:[%s317 + $0x89] sm:$0x3f]
      %v450 = vlaneseq
      %v451 = vshrl.u32 %v450, 7
      %v452 = vsub.s32 1, %v451
      %v453 = vrot.slane %v307, %v452
      %v454 = vmul.f32 %v432, %v453
      %v455 = vmul.f32 %v433, %v453
      %v456 = vmul.f32 %v434, %v453
      %v457 = vmul.f32 %v435, %v453
      %v458 = vmul.f32 %v436, %v453
      %v459 = vmul.f32 %v437, %v453
      %v460 = vmul.f32 %v438, %v453
      %v461 = vmul.f32 %v439, %v453
      %v462 = vmul.f32 %v440, %v453
      %v463 = vmul.f32 %v441, %v453
      %v464 = vmul.f32 %v442, %v453
      %v465 = vmul.f32 %v443, %v453
      %v466 = vmul.f32 %v444, %v453
      %v467 = vmul.f32 %v445, %v453
      %v468 = vadd.f32 %v418, %v454
      %v469 = vadd.f32 %v419, %v455
      %v470 = vadd.f32 %v420, %v456
      %v471 = vadd.f32 %v421, %v457
      %v472 = vadd.f32 %v422, %v458
      %v473 = vadd.f32 %v423, %v459
      %v474 = vadd.f32 %v424, %v460
      %v475 = vadd.f32 %v425, %v461
      %v476 = vadd.f32 %v426, %v462
      %v477 = vadd.f32 %v427, %v463
      %v478 = vadd.f32 %v428, %v464
      %v479 = vadd.f32 %v429, %v465
      %v480 = vadd.f32 %v430, %v466
      %v481 = vadd.f32 %v431, %v467
      %v482 = vlaneseq
      %v483 = vshrl.u32 %v482, 7
      %v484 = vsub.s32 4, %v483
      %v485 = vrot.slane %v307, %v484
      %v486 = vmul.f32 %v434, %v485
      %v487 = vmul.f32 %v435, %v485
      %v488 = vmul.f32 %v436, %v485
      %v489 = vmul.f32 %v437, %v485
      %v490 = vmul.f32 %v438, %v485
      %v491 = vmul.f32 %v439, %v485
      %v492 = vmul.f32 %v440, %v485
      %v493 = vmul.f32 %v441, %v485
      %v494 = vmul.f32 %v442, %v485
      %v495 = vmul.f32 %v443, %v485
      %v496 = vmul.f32 %v444, %v485
      %v497 = vmul.f32 %v445, %v485
      %v498 = vmul.f32 %v446, %v485
      %v499 = vmul.f32 %v447, %v485
      %v500 = vadd.f32 %v468, %v486
      %v501 = vadd.f32 %v469, %v487
      %v502 = vadd.f32 %v470, %v488
      %v503 = vadd.f32 %v471, %v489
      %v504 = vadd.f32 %v472, %v490
      %v505 = vadd.f32 %v473, %v491
      %v506 = vadd.f32 %v474, %v492
      %v507 = vadd.f32 %v475, %v493
      %v508 = vadd.f32 %v476, %v494
      %v509 = vadd.f32 %v477, %v495
      %v510 = vadd.f32 %v478, %v496
      %v511 = vadd.f32 %v479, %v497
      %v512 = vadd.f32 %v480, %v498
      %v513 = vadd.f32 %v481, %v499
      %v514 = vlaneseq
      %v515 = vshrl.u32 %v514, 7
      %v516 = vsub.s32 7, %v515
      %v517 = vrot.slane %v307, %v516
      %v518 = vmul.f32 %v436, %v517
      %v519 = vmul.f32 %v437, %v517
      %v520 = vmul.f32 %v438, %v517
      %v521 = vmul.f32 %v439, %v517
      %v522 = vmul.f32 %v440, %v517
      %v523 = vmul.f32 %v441, %v517
      %v524 = vmul.f32 %v442, %v517
      %v525 = vmul.f32 %v443, %v517
      %v526 = vmul.f32 %v444, %v517
      %v527 = vmul.f32 %v445, %v517
      %v528 = vmul.f32 %v446, %v517
      %v529 = vmul.f32 %v447, %v517
      %v530 = vmul.f32 %v448, %v517
      %v531 = vmul.f32 %v449, %v517
      %v532 = vadd.f32 %v500, %v518
      %v533 = vadd.f32 %v501, %v519
      %v534 = vadd.f32 %v502, %v520
      %v535 = vadd.f32 %v503, %v521
      %v536 = vadd.f32 %v504, %v522
      %v537 = vadd.f32 %v505, %v523
      %v538 = vadd.f32 %v506, %v524
      %v539 = vadd.f32 %v507, %v525
      %v540 = vadd.f32 %v508, %v526
      %v541 = vadd.f32 %v509, %v527
      %v542 = vadd.f32 %v510, %v528
      %v543 = vadd.f32 %v511, %v529
      %v544 = vadd.f32 %v512, %v530
      %v545 = vadd.f32 %v513, %v531
      %v546 = vld [vmem:[%s317 + $0x2] sm:$0xff]
      %v547 = vld [vmem:[%s317 + $0xa] sm:$0x3f]
      %v548 = vld [vmem:[%s317 + $0x12] sm:$0xff]
      %v549 = vld [vmem:[%s317 + $0x1a] sm:$0x3f]
      %v550 = vld [vmem:[%s317 + $0x22] sm:$0xff]
      %v551 = vld [vmem:[%s317 + $0x2a] sm:$0x3f]
      %v552 = vld [vmem:[%s317 + $0x32] sm:$0xff]
      %v553 = vld [vmem:[%s317 + $0x3a] sm:$0x3f]
      %v554 = vld [vmem:[%s317 + $0x42] sm:$0xff]
      %v555 = vld [vmem:[%s317 + $0x4a] sm:$0x3f]
      %v556 = vld [vmem:[%s317 + $0x52] sm:$0xff]
      %v557 = vld [vmem:[%s317 + $0x5a] sm:$0x3f]
      %v558 = vld [vmem:[%s317 + $0x62] sm:$0xff]
      %v559 = vld [vmem:[%s317 + $0x6a] sm:$0x3f]
      %v560 = vld [vmem:[%s317 + $0x72] sm:$0xff]
      %v561 = vld [vmem:[%s317 + $0x7a] sm:$0x3f]
      %v562 = vld [vmem:[%s317 + $0x82] sm:$0xff]
      %v563 = vld [vmem:[%s317 + $0x8a] sm:$0x3f]
      %v564 = vlaneseq
      %v565 = vshrl.u32 %v564, 7
      %v566 = vsub.s32 2, %v565
      %v567 = vrot.slane %v307, %v566
      %v568 = vmul.f32 %v546, %v567
      %v569 = vmul.f32 %v547, %v567
      %v570 = vmul.f32 %v548, %v567
      %v571 = vmul.f32 %v549, %v567
      %v572 = vmul.f32 %v550, %v567
      %v573 = vmul.f32 %v551, %v567
      %v574 = vmul.f32 %v552, %v567
      %v575 = vmul.f32 %v553, %v567
      %v576 = vmul.f32 %v554, %v567
      %v577 = vmul.f32 %v555, %v567
      %v578 = vmul.f32 %v556, %v567
      %v579 = vmul.f32 %v557, %v567
      %v580 = vmul.f32 %v558, %v567
      %v581 = vmul.f32 %v559, %v567
      %v582 = vadd.f32 %v532, %v568
      %v583 = vadd.f32 %v533, %v569
      %v584 = vadd.f32 %v534, %v570
      %v585 = vadd.f32 %v535, %v571
      %v586 = vadd.f32 %v536, %v572
      %v587 = vadd.f32 %v537, %v573
      %v588 = vadd.f32 %v538, %v574
      %v589 = vadd.f32 %v539, %v575
      %v590 = vadd.f32 %v540, %v576
      %v591 = vadd.f32 %v541, %v577
      %v592 = vadd.f32 %v542, %v578
      %v593 = vadd.f32 %v543, %v579
      %v594 = vadd.f32 %v544, %v580
      %v595 = vadd.f32 %v545, %v581
      %v596 = vlaneseq
      %v597 = vshrl.u32 %v596, 7
      %v598 = vsub.s32 5, %v597
      %v599 = vrot.slane %v307, %v598
      %v600 = vmul.f32 %v548, %v599
      %v601 = vmul.f32 %v549, %v599
      %v602 = vmul.f32 %v550, %v599
      %v603 = vmul.f32 %v551, %v599
      %v604 = vmul.f32 %v552, %v599
      %v605 = vmul.f32 %v553, %v599
      %v606 = vmul.f32 %v554, %v599
      %v607 = vmul.f32 %v555, %v599
      %v608 = vmul.f32 %v556, %v599
      %v609 = vmul.f32 %v557, %v599
      %v610 = vmul.f32 %v558, %v599
      %v611 = vmul.f32 %v559, %v599
      %v612 = vmul.f32 %v560, %v599
      %v613 = vmul.f32 %v561, %v599
      %v614 = vadd.f32 %v582, %v600
      %v615 = vadd.f32 %v583, %v601
      %v616 = vadd.f32 %v584, %v602
      %v617 = vadd.f32 %v585, %v603
      %v618 = vadd.f32 %v586, %v604
      %v619 = vadd.f32 %v587, %v605
      %v620 = vadd.f32 %v588, %v606
      %v621 = vadd.f32 %v589, %v607
      %v622 = vadd.f32 %v590, %v608
      %v623 = vadd.f32 %v591, %v609
      %v624 = vadd.f32 %v592, %v610
      %v625 = vadd.f32 %v593, %v611
      %v626 = vadd.f32 %v594, %v612
      %v627 = vadd.f32 %v595, %v613
      %v628 = vlaneseq
      %v629 = vshrl.u32 %v628, 7
      %v630 = vsub.s32 0, %v629
      %v631 = vrot.slane %v308, %v630
      %v632 = vmul.f32 %v550, %v631
      %v633 = vmul.f32 %v551, %v631
      %v634 = vmul.f32 %v552, %v631
      %v635 = vmul.f32 %v553, %v631
      %v636 = vmul.f32 %v554, %v631
      %v637 = vmul.f32 %v555, %v631
      %v638 = vmul.f32 %v556, %v631
      %v639 = vmul.f32 %v557, %v631
      %v640 = vmul.f32 %v558, %v631
      %v641 = vmul.f32 %v559, %v631
      %v642 = vmul.f32 %v560, %v631
      %v643 = vmul.f32 %v561, %v631
      %v644 = vmul.f32 %v562, %v631
      %v645 = vmul.f32 %v563, %v631
      %v646 = vadd.f32 %v614, %v632
      %v647 = vadd.f32 %v615, %v633
      %v648 = vadd.f32 %v616, %v634
      %v649 = vadd.f32 %v617, %v635
      %v650 = vadd.f32 %v618, %v636
      %v651 = vadd.f32 %v619, %v637
      %v652 = vadd.f32 %v620, %v638
      %v653 = vadd.f32 %v621, %v639
      %v654 = vadd.f32 %v622, %v640
      %v655 = vadd.f32 %v623, %v641
      %v656 = vadd.f32 %v624, %v642
      %v657 = vadd.f32 %v625, %v643
      %v658 = vadd.f32 %v626, %v644
      %v659 = vadd.f32 %v627, %v645
      %s660 = sld [smem:[#allocation2]]
      %vm661 = vcmp.gt.f32.partialorder %v646, 0.0
      %vm662 = vcmp.gt.f32.partialorder %v647, 0.0
      %vm663 = vcmp.gt.f32.partialorder %v648, 0.0
      %vm664 = vcmp.gt.f32.partialorder %v649, 0.0
      %vm665 = vcmp.gt.f32.partialorder %v650, 0.0
      %vm666 = vcmp.gt.f32.partialorder %v651, 0.0
      %vm667 = vcmp.gt.f32.partialorder %v652, 0.0
      %vm668 = vcmp.gt.f32.partialorder %v653, 0.0
      %vm669 = vcmp.gt.f32.partialorder %v654, 0.0
      %vm670 = vcmp.gt.f32.partialorder %v655, 0.0
      %vm671 = vcmp.gt.f32.partialorder %v656, 0.0
      %vm672 = vcmp.gt.f32.partialorder %v657, 0.0
      %vm673 = vcmp.gt.f32.partialorder %v658, 0.0
      %vm674 = vcmp.gt.f32.partialorder %v659, 0.0
      %v675 = vstv %s660
      %v676 = vmul.f32 %v675, %v646
      %v677 = vmul.f32 %v675, %v647
      %v678 = vmul.f32 %v675, %v648
      %v679 = vmul.f32 %v675, %v649
      %v680 = vmul.f32 %v675, %v650
      %v681 = vmul.f32 %v675, %v651
      %v682 = vmul.f32 %v675, %v652
      %v683 = vmul.f32 %v675, %v653
      %v684 = vmul.f32 %v675, %v654
      %v685 = vmul.f32 %v675, %v655
      %v686 = vmul.f32 %v675, %v656
      %v687 = vmul.f32 %v675, %v657
      %v688 = vmul.f32 %v675, %v658
      %v689 = vmul.f32 %v675, %v659
      %v690 = vsel %vm661, %v646, %v676
      %v691 = vsel %vm662, %v647, %v677
      %v692 = vsel %vm663, %v648, %v678
      %v693 = vsel %vm664, %v649, %v679
      %v694 = vsel %vm665, %v650, %v680
      %v695 = vsel %vm666, %v651, %v681
      %v696 = vsel %vm667, %v652, %v682
      %v697 = vsel %vm668, %v653, %v683
      %v698 = vsel %vm669, %v654, %v684
      %v699 = vsel %vm670, %v655, %v685
      %v700 = vsel %vm671, %v656, %v686
      %v701 = vsel %vm672, %v657, %v687
      %v702 = vsel %vm673, %v658, %v688
      %v703 = vsel %vm674, %v659, %v689
      %v704 = vld [vmem:[%s3] sm:$0xf]
      %v705 = vld [vmem:[%s4] sm:$0x1]
      %v707 = vlaneseq
      %v708 = vshrl.u32 %v707, 7
      %v709 = vsub.s32 0, %v708
      %v710 = vrot.slane %v705, %v709
      %713 = vset.pattern.permute.xlu0 0
      %714 = vperm.xlu0 %713, %v690
      %v715 = vpop.permute.xlu0 %714
      %718 = vset.pattern.permute.xlu0 0
      %719 = vperm.xlu0 %718, %v691
      %v720 = vpop.permute.xlu0 %719
      %723 = vset.pattern.permute.xlu0 0
      %724 = vperm.xlu0 %723, %v692
      %v725 = vpop.permute.xlu0 %724
      %728 = vset.pattern.permute.xlu0 0
      %729 = vperm.xlu0 %728, %v693
      %v730 = vpop.permute.xlu0 %729
      %733 = vset.pattern.permute.xlu0 0
      %734 = vperm.xlu0 %733, %v694
      %v735 = vpop.permute.xlu0 %734
      %738 = vset.pattern.permute.xlu0 0
      %739 = vperm.xlu0 %738, %v695
      %v740 = vpop.permute.xlu0 %739
      %743 = vset.pattern.permute.xlu0 0
      %744 = vperm.xlu0 %743, %v696
      %v745 = vpop.permute.xlu0 %744
      %748 = vset.pattern.permute.xlu0 0
      %749 = vperm.xlu0 %748, %v697
      %v750 = vpop.permute.xlu0 %749
      %753 = vset.pattern.permute.xlu0 0
      %754 = vperm.xlu0 %753, %v698
      %v755 = vpop.permute.xlu0 %754
      %758 = vset.pattern.permute.xlu0 0
      %759 = vperm.xlu0 %758, %v699
      %v760 = vpop.permute.xlu0 %759
      %763 = vset.pattern.permute.xlu0 0
      %764 = vperm.xlu0 %763, %v700
      %v765 = vpop.permute.xlu0 %764
      %768 = vset.pattern.permute.xlu0 0
      %769 = vperm.xlu0 %768, %v701
      %v770 = vpop.permute.xlu0 %769
      %773 = vset.pattern.permute.xlu0 0
      %774 = vperm.xlu0 %773, %v702
      %v775 = vpop.permute.xlu0 %774
      %778 = vset.pattern.permute.xlu0 0
      %779 = vperm.xlu0 %778, %v703
      %v780 = vpop.permute.xlu0 %779
      %v782 = vlaneseq
      %v783 = vshrl.u32 %v782, 7
      %v784 = vsub.s32 0, %v783
      %v785 = vrot.slane %v704, %v784
      %v786 = vmul.f32 %v715, %v785
      %v787 = vmul.f32 %v720, %v785
      %v788 = vmul.f32 %v725, %v785
      %v789 = vmul.f32 %v730, %v785
      %v790 = vmul.f32 %v735, %v785
      %v791 = vmul.f32 %v740, %v785
      %v792 = vmul.f32 %v745, %v785
      %v793 = vmul.f32 %v750, %v785
      %v794 = vmul.f32 %v755, %v785
      %v795 = vmul.f32 %v760, %v785
      %v796 = vmul.f32 %v765, %v785
      %v797 = vmul.f32 %v770, %v785
      %v798 = vmul.f32 %v775, %v785
      %v799 = vmul.f32 %v780, %v785
      %v800 = vadd.f32 %v710, %v786
      %v801 = vadd.f32 %v710, %v787
      %v802 = vadd.f32 %v710, %v788
      %v803 = vadd.f32 %v710, %v789
      %v804 = vadd.f32 %v710, %v790
      %v805 = vadd.f32 %v710, %v791
      %v806 = vadd.f32 %v710, %v792
      %v807 = vadd.f32 %v710, %v793
      %v808 = vadd.f32 %v710, %v794
      %v809 = vadd.f32 %v710, %v795
      %v810 = vadd.f32 %v710, %v796
      %v811 = vadd.f32 %v710, %v797
      %v812 = vadd.f32 %v710, %v798
      %v813 = vadd.f32 %v710, %v799
      %814 = vset.pattern.permute.xlu0 1
      %815 = vperm.xlu0 %814, %v690
      %v816 = vpop.permute.xlu0 %815
      %818 = vset.pattern.permute.xlu0 1
      %819 = vperm.xlu0 %818, %v691
      %v820 = vpop.permute.xlu0 %819
      %822 = vset.pattern.permute.xlu0 1
      %823 = vperm.xlu0 %822, %v692
      %v824 = vpop.permute.xlu0 %823
      %826 = vset.pattern.permute.xlu0 1
      %827 = vperm.xlu0 %826, %v693
      %v828 = vpop.permute.xlu0 %827
      %830 = vset.pattern.permute.xlu0 1
      %831 = vperm.xlu0 %830, %v694
      %v832 = vpop.permute.xlu0 %831
      %834 = vset.pattern.permute.xlu0 1
      %835 = vperm.xlu0 %834, %v695
      %v836 = vpop.permute.xlu0 %835
      %838 = vset.pattern.permute.xlu0 1
      %839 = vperm.xlu0 %838, %v696
      %v840 = vpop.permute.xlu0 %839
      %842 = vset.pattern.permute.xlu0 1
      %843 = vperm.xlu0 %842, %v697
      %v844 = vpop.permute.xlu0 %843
      %846 = vset.pattern.permute.xlu0 1
      %847 = vperm.xlu0 %846, %v698
      %v848 = vpop.permute.xlu0 %847
      %850 = vset.pattern.permute.xlu0 1
      %851 = vperm.xlu0 %850, %v699
      %v852 = vpop.permute.xlu0 %851
      %854 = vset.pattern.permute.xlu0 1
      %855 = vperm.xlu0 %854, %v700
      %v856 = vpop.permute.xlu0 %855
      %858 = vset.pattern.permute.xlu0 1
      %859 = vperm.xlu0 %858, %v701
      %v860 = vpop.permute.xlu0 %859
      %862 = vset.pattern.permute.xlu0 1
      %863 = vperm.xlu0 %862, %v702
      %v864 = vpop.permute.xlu0 %863
      %866 = vset.pattern.permute.xlu0 1
      %867 = vperm.xlu0 %866, %v703
      %v868 = vpop.permute.xlu0 %867
      %v870 = vlaneseq
      %v871 = vshrl.u32 %v870, 7
      %v872 = vsub.s32 1, %v871
      %v873 = vrot.slane %v704, %v872
      %v874 = vmul.f32 %v816, %v873
      %v875 = vmul.f32 %v820, %v873
      %v876 = vmul.f32 %v824, %v873
      %v877 = vmul.f32 %v828, %v873
      %v878 = vmul.f32 %v832, %v873
      %v879 = vmul.f32 %v836, %v873
      %v880 = vmul.f32 %v840, %v873
      %v881 = vmul.f32 %v844, %v873
      %v882 = vmul.f32 %v848, %v873
      %v883 = vmul.f32 %v852, %v873
      %v884 = vmul.f32 %v856, %v873
      %v885 = vmul.f32 %v860, %v873
      %v886 = vmul.f32 %v864, %v873
      %v887 = vmul.f32 %v868, %v873
      %v888 = vadd.f32 %v800, %v874
      %v889 = vadd.f32 %v801, %v875
      %v890 = vadd.f32 %v802, %v876
      %v891 = vadd.f32 %v803, %v877
      %v892 = vadd.f32 %v804, %v878
      %v893 = vadd.f32 %v805, %v879
      %v894 = vadd.f32 %v806, %v880
      %v895 = vadd.f32 %v807, %v881
      %v896 = vadd.f32 %v808, %v882
      %v897 = vadd.f32 %v809, %v883
      %v898 = vadd.f32 %v810, %v884
      %v899 = vadd.f32 %v811, %v885
      %v900 = vadd.f32 %v812, %v886
      %v901 = vadd.f32 %v813, %v887
      %902 = vset.pattern.permute.xlu0 2
      %903 = vperm.xlu0 %902, %v690
      %v904 = vpop.permute.xlu0 %903
      %906 = vset.pattern.permute.xlu0 2
      %907 = vperm.xlu0 %906, %v691
      %v908 = vpop.permute.xlu0 %907
      %910 = vset.pattern.permute.xlu0 2
      %911 = vperm.xlu0 %910, %v692
      %v912 = vpop.permute.xlu0 %911
      %914 = vset.pattern.permute.xlu0 2
      %915 = vperm.xlu0 %914, %v693
      %v916 = vpop.permute.xlu0 %915
      %918 = vset.pattern.permute.xlu0 2
      %919 = vperm.xlu0 %918, %v694
      %v920 = vpop.permute.xlu0 %919
      %922 = vset.pattern.permute.xlu0 2
      %923 = vperm.xlu0 %922, %v695
      %v924 = vpop.permute.xlu0 %923
      %926 = vset.pattern.permute.xlu0 2
      %927 = vperm.xlu0 %926, %v696
      %v928 = vpop.permute.xlu0 %927
      %930 = vset.pattern.permute.xlu0 2
      %931 = vperm.xlu0 %930, %v697
      %v932 = vpop.permute.xlu0 %931
      %934 = vset.pattern.permute.xlu0 2
      %935 = vperm.xlu0 %934, %v698
      %v936 = vpop.permute.xlu0 %935
      %938 = vset.pattern.permute.xlu0 2
      %939 = vperm.xlu0 %938, %v699
      %v940 = vpop.permute.xlu0 %939
      %942 = vset.pattern.permute.xlu0 2
      %943 = vperm.xlu0 %942, %v700
      %v944 = vpop.permute.xlu0 %943
      %946 = vset.pattern.permute.xlu0 2
      %947 = vperm.xlu0 %946, %v701
      %v948 = vpop.permute.xlu0 %947
      %950 = vset.pattern.permute.xlu0 2
      %951 = vperm.xlu0 %950, %v702
      %v952 = vpop.permute.xlu0 %951
      %954 = vset.pattern.permute.xlu0 2
      %955 = vperm.xlu0 %954, %v703
      %v956 = vpop.permute.xlu0 %955
      %v958 = vlaneseq
      %v959 = vshrl.u32 %v958, 7
      %v960 = vsub.s32 2, %v959
      %v961 = vrot.slane %v704, %v960
      %v962 = vmul.f32 %v904, %v961
      %v963 = vmul.f32 %v908, %v961
      %v964 = vmul.f32 %v912, %v961
      %v965 = vmul.f32 %v916, %v961
      %v966 = vmul.f32 %v920, %v961
      %v967 = vmul.f32 %v924, %v961
      %v968 = vmul.f32 %v928, %v961
      %v969 = vmul.f32 %v932, %v961
      %v970 = vmul.f32 %v936, %v961
      %v971 = vmul.f32 %v940, %v961
      %v972 = vmul.f32 %v944, %v961
      %v973 = vmul.f32 %v948, %v961
      %v974 = vmul.f32 %v952, %v961
      %v975 = vmul.f32 %v956, %v961
      %v976 = vadd.f32 %v888, %v962
      %v977 = vadd.f32 %v889, %v963
      %v978 = vadd.f32 %v890, %v964
      %v979 = vadd.f32 %v891, %v965
      %v980 = vadd.f32 %v892, %v966
      %v981 = vadd.f32 %v893, %v967
      %v982 = vadd.f32 %v894, %v968
      %v983 = vadd.f32 %v895, %v969
      %v984 = vadd.f32 %v896, %v970
      %v985 = vadd.f32 %v897, %v971
      %v986 = vadd.f32 %v898, %v972
      %v987 = vadd.f32 %v899, %v973
      %v988 = vadd.f32 %v900, %v974
      %v989 = vadd.f32 %v901, %v975
      %990 = vset.pattern.permute.xlu0 3
      %991 = vperm.xlu0 %990, %v690
      %v992 = vpop.permute.xlu0 %991
      %994 = vset.pattern.permute.xlu0 3
      %995 = vperm.xlu0 %994, %v691
      %v996 = vpop.permute.xlu0 %995
      %998 = vset.pattern.permute.xlu0 3
      %999 = vperm.xlu0 %998, %v692
      %v1000 = vpop.permute.xlu0 %999
      %1002 = vset.pattern.permute.xlu0 3
      %1003 = vperm.xlu0 %1002, %v693
      %v1004 = vpop.permute.xlu0 %1003
      %1006 = vset.pattern.permute.xlu0 3
      %1007 = vperm.xlu0 %1006, %v694
      %v1008 = vpop.permute.xlu0 %1007
      %1010 = vset.pattern.permute.xlu0 3
      %1011 = vperm.xlu0 %1010, %v695
      %v1012 = vpop.permute.xlu0 %1011
      %1014 = vset.pattern.permute.xlu0 3
      %1015 = vperm.xlu0 %1014, %v696
      %v1016 = vpop.permute.xlu0 %1015
      %1018 = vset.pattern.permute.xlu0 3
      %1019 = vperm.xlu0 %1018, %v697
      %v1020 = vpop.permute.xlu0 %1019
      %1022 = vset.pattern.permute.xlu0 3
      %1023 = vperm.xlu0 %1022, %v698
      %v1024 = vpop.permute.xlu0 %1023
      %1026 = vset.pattern.permute.xlu0 3
      %1027 = vperm.xlu0 %1026, %v699
      %v1028 = vpop.permute.xlu0 %1027
      %1030 = vset.pattern.permute.xlu0 3
      %1031 = vperm.xlu0 %1030, %v700
      %v1032 = vpop.permute.xlu0 %1031
      %1034 = vset.pattern.permute.xlu0 3
      %1035 = vperm.xlu0 %1034, %v701
      %v1036 = vpop.permute.xlu0 %1035
      %1038 = vset.pattern.permute.xlu0 3
      %1039 = vperm.xlu0 %1038, %v702
      %v1040 = vpop.permute.xlu0 %1039
      %1042 = vset.pattern.permute.xlu0 3
      %1043 = vperm.xlu0 %1042, %v703
      %v1044 = vpop.permute.xlu0 %1043
      %v1046 = vlaneseq
      %v1047 = vshrl.u32 %v1046, 7
      %v1048 = vsub.s32 3, %v1047
      %v1049 = vrot.slane %v704, %v1048
      %v1050 = vmul.f32 %v992, %v1049
      %v1051 = vmul.f32 %v996, %v1049
      %v1052 = vmul.f32 %v1000, %v1049
      %v1053 = vmul.f32 %v1004, %v1049
      %v1054 = vmul.f32 %v1008, %v1049
      %v1055 = vmul.f32 %v1012, %v1049
      %v1056 = vmul.f32 %v1016, %v1049
      %v1057 = vmul.f32 %v1020, %v1049
      %v1058 = vmul.f32 %v1024, %v1049
      %v1059 = vmul.f32 %v1028, %v1049
      %v1060 = vmul.f32 %v1032, %v1049
      %v1061 = vmul.f32 %v1036, %v1049
      %v1062 = vmul.f32 %v1040, %v1049
      %v1063 = vmul.f32 %v1044, %v1049
      %v1064 = vadd.f32 %v976, %v1050
      %v1065 = vadd.f32 %v977, %v1051
      %v1066 = vadd.f32 %v978, %v1052
      %v1067 = vadd.f32 %v979, %v1053
      %v1068 = vadd.f32 %v980, %v1054
      %v1069 = vadd.f32 %v981, %v1055
      %v1070 = vadd.f32 %v982, %v1056
      %v1071 = vadd.f32 %v983, %v1057
      %v1072 = vadd.f32 %v984, %v1058
      %v1073 = vadd.f32 %v985, %v1059
      %v1074 = vadd.f32 %v986, %v1060
      %v1075 = vadd.f32 %v987, %v1061
      %v1076 = vadd.f32 %v988, %v1062
      %v1077 = vadd.f32 %v989, %v1063
      %s1078 = sld [smem:[#allocation3]]
      %vm1079 = vcmp.gt.f32.partialorder %v1064, 0.0
      %vm1080 = vcmp.gt.f32.partialorder %v1065, 0.0
      %vm1081 = vcmp.gt.f32.partialorder %v1066, 0.0
      %vm1082 = vcmp.gt.f32.partialorder %v1067, 0.0
      %vm1083 = vcmp.gt.f32.partialorder %v1068, 0.0
      %vm1084 = vcmp.gt.f32.partialorder %v1069, 0.0
      %vm1085 = vcmp.gt.f32.partialorder %v1070, 0.0
      %vm1086 = vcmp.gt.f32.partialorder %v1071, 0.0
      %vm1087 = vcmp.gt.f32.partialorder %v1072, 0.0
      %vm1088 = vcmp.gt.f32.partialorder %v1073, 0.0
      %vm1089 = vcmp.gt.f32.partialorder %v1074, 0.0
      %vm1090 = vcmp.gt.f32.partialorder %v1075, 0.0
      %vm1091 = vcmp.gt.f32.partialorder %v1076, 0.0
      %vm1092 = vcmp.gt.f32.partialorder %v1077, 0.0
      %v1093 = vstv %s1078
      %v1094 = vmul.f32 %v1093, %v1064
      %v1095 = vmul.f32 %v1093, %v1065
      %v1096 = vmul.f32 %v1093, %v1066
      %v1097 = vmul.f32 %v1093, %v1067
      %v1098 = vmul.f32 %v1093, %v1068
      %v1099 = vmul.f32 %v1093, %v1069
      %v1100 = vmul.f32 %v1093, %v1070
      %v1101 = vmul.f32 %v1093, %v1071
      %v1102 = vmul.f32 %v1093, %v1072
      %v1103 = vmul.f32 %v1093, %v1073
      %v1104 = vmul.f32 %v1093, %v1074
      %v1105 = vmul.f32 %v1093, %v1075
      %v1106 = vmul.f32 %v1093, %v1076
      %v1107 = vmul.f32 %v1093, %v1077
      %v1108 = vsel %vm1079, %v1064, %v1094
      %v1109 = vsel %vm1080, %v1065, %v1095
      %v1110 = vsel %vm1081, %v1066, %v1096
      %v1111 = vsel %vm1082, %v1067, %v1097
      %v1112 = vsel %vm1083, %v1068, %v1098
      %v1113 = vsel %vm1084, %v1069, %v1099
      %v1114 = vsel %vm1085, %v1070, %v1100
      %v1115 = vsel %vm1086, %v1071, %v1101
      %v1116 = vsel %vm1087, %v1072, %v1102
      %v1117 = vsel %vm1088, %v1073, %v1103
      %v1118 = vsel %vm1089, %v1074, %v1104
      %v1119 = vsel %vm1090, %v1075, %v1105
      %v1120 = vsel %vm1091, %v1076, %v1106
      %v1121 = vsel %vm1092, %v1077, %v1107
      %vm1122 = vcmask 64512
      %1123 = vst.msk [vmem:[%s304] sm:$0xff] %vm1122, %v1108
      %vm1124 = vcmask 62464
      %1125 = vst.msk [vmem:[%s304 + $0x8] sm:$0x3f] %vm1124, %v1109
      %1126 = vst.msk [vmem:[%s304 + $0x10] sm:$0xff] %vm1122, %v1110
      %1127 = vst.msk [vmem:[%s304 + $0x18] sm:$0x3f] %vm1124, %v1111
      %1128 = vst.msk [vmem:[%s304 + $0x20] sm:$0xff] %vm1122, %v1112
      %1129 = vst.msk [vmem:[%s304 + $0x28] sm:$0x3f] %vm1124, %v1113
      %1130 = vst.msk [vmem:[%s304 + $0x30] sm:$0xff] %vm1122, %v1114
      %1131 = vst.msk [vmem:[%s304 + $0x38] sm:$0x3f] %vm1124, %v1115
      %1132 = vst.msk [vmem:[%s304 + $0x40] sm:$0xff] %vm1122, %v1116
      %1133 = vst.msk [vmem:[%s304 + $0x48] sm:$0x3f] %vm1124, %v1117
      %1134 = vst.msk [vmem:[%s304 + $0x50] sm:$0xff] %vm1122, %v1118
      %1135 = vst.msk [vmem:[%s304 + $0x58] sm:$0x3f] %vm1124, %v1119
      %1136 = vst.msk [vmem:[%s304 + $0x60] sm:$0xff] %vm1122, %v1120
      %1137 = vst.msk [vmem:[%s304 + $0x68] sm:$0x3f] %vm1124, %v1121
      %s1138 = smul.u32 7, %s25
      %p1139 = scmp.lt.s32.totalorder %s24, 1
      %s1140 = scalar_select %p1139, %s24, 1
      %p1141 = scmp.lt.s32.totalorder %s1138, 13
      %s1142 = scalar_select %p1141, %s1138, 13
      %s1143 = smul.addr %s1142, 2
      %s1144 = smul.addr %s1140, 28
      %s1145 = sadd.s32 %s1143, %s1144
      %s1146 = smul.addr %s1145, 8
      %s1147 = scalar_lea.vmem %s7, %s1146
      // Predicated region
      $region49: #{tpu_custom_call.1} parent=47 // pred_check
        %p1148 = pneg %p204
      $region50: #{tpu_custom_call.1} parent=47 // pred_check_branch
        %1150 = sbr.rel (%p1148) target = $region52
      $region51: #{tpu_custom_call.1} parent=47 // pred_region
        %s1151 = smul.u32 7, %s25
      $region52: #{tpu_custom_call.1} parent=47 // pred_fallthru
        _
    $region48: #{tpu_custom_call.1} parent=5 // pred_fallthru
      _
    %p1152 = scmp.le.s32.totalorder 2, %s15
    // Predicated region
    $region53: #{tpu_custom_call.1} parent=5 // pred_check
      %p1153 = pneg %p1152
    $region54: #{tpu_custom_call.1} parent=5 // pred_check_branch
      %1155 = sbr.rel (%p1153) target = $region56
    $region55: #{tpu_custom_call.1} parent=5 // pred_region
      %s1156 = ssub.s32 %s15, 2
      // Predicated region
      $region57: #{tpu_custom_call.1} parent=55 // pred_check
        %p1157 = pneg %p210
      $region58: #{tpu_custom_call.1} parent=55 // pred_check_branch
        %1159 = sbr.rel (%p1157) target = $region60
      $region59: #{tpu_custom_call.1} parent=55 // pred_region
        %s1160 = smul.u32 7, %s27
        %p1161 = scmp.lt.s32.totalorder %s26, 1
        %s1162 = scalar_select %p1161, %s26, 1
        %p1163 = scmp.lt.s32.totalorder %s1160, 13
        %s1164 = scalar_select %p1163, %s1160, 13
        %s1165 = smul.addr %s1164, 2
        %s1166 = smul.addr %s1162, 28
        %s1167 = sadd.s32 %s1165, %s1166
        %s1168 = smul.addr %s1167, 8
        %s1169 = scalar_lea.vmem %s7, %s1168
      $region60: #{tpu_custom_call.1} parent=55 // pred_fallthru
        _
    $region56: #{tpu_custom_call.1} parent=5 // pred_fallthru
      _
  $region6: #{tpu_custom_call.1} parent=0 // loop_footer
    %s19 = sadd.s32 1, %s15
  $region7: #{tpu_custom_call.1} parent=0 // loop_footer_branch
    %14 = sbr.rel target = $region3
  $region8: #{tpu_custom_call.1} parent=0 // loop_exit
    _

</llo_original>
